<compile_context>
chip_gen: v7x
topology: tpu7x:2x2x1
jax: 0.10.0
libtpu: 0.0.40
codegen_flags: <defaults>
</compile_context>

<pallas_src>
import jax
import jax.numpy as jnp
from jax.experimental import pallas as pl
from jax.experimental.pallas import tpu as pltpu


def _critic_kernel(x_ref, w1_ref, b1_ref, w2_ref, b2_ref, o_ref):
    # hidden = relu(x @ W1 + b1)                          (TB, Hpad) on the MXU
    h = jnp.dot(x_ref[...], w1_ref[...], preferred_element_type=jnp.float32)
    h = jnp.maximum(h + b1_ref[...], 0.0)

    # value = tanh(<h, w2> + b2)  -- out_dim == 1, so skip the MXU for stage 2:
    # work in transposed orientation so the result lands lane-dense, using a
    # VPU multiply + cross-sublane (XLU) reduction instead of an N=1 matmul.
    ht = h.T                                              # (Hpad, TB)  XLU transpose
    y = jnp.sum(ht * w2_ref[...], axis=0, keepdims=True)  # (1, TB)     sublane reduce
    y = jnp.tanh(y + b2_ref[0, 0])                        # b2 scalar from SMEM, tanh on EUP

    # lane-dense store: batch lives on the lane axis of the output block.
    o_ref[...] = y[None]                                  # (1, 1, TB)


def critic_forward(x, w1, b1, w2, b2, *, block_batch=512):
    """tanh(relu(x @ w1 + b1) @ w2 + b2) fused in one Pallas TPU kernel.

    x:  (batch, in_dim) float32
    w1: (in_dim, hidden)   b1: (hidden,) or (1, hidden)
    w2: (hidden, 1)        b2: scalar / (1,) / (1, 1)
    block_batch: batch tile (rounded to a multiple of 128); 512 keeps the
    double-buffered x tiles and the transposed-hidden temporaries far under the
    VMEM scoped defaults on v5e / v6e / v7x for typical critic widths.
    """
    x = jnp.asarray(x, jnp.float32)
    batch, in_dim = x.shape
    hidden = w1.shape[1]
    if tuple(w2.shape) != (hidden, 1):
        raise ValueError("critic head must have out_dim == 1")

    lanes = 128
    h_pad = pl.cdiv(hidden, lanes) * lanes
    block_batch = pl.cdiv(max(block_batch, lanes), lanes) * lanes
    tb = min(block_batch, pl.cdiv(batch, lanes) * lanes)   # batch tile, multiple of 128
    b_pad = pl.cdiv(batch, tb) * tb
    grid = (b_pad // tb,)

    # One-time wrapper-side padding / reshaping (weights are tiny and stay VMEM-resident).
    xp = jnp.pad(x, ((0, b_pad - batch), (0, 0)))
    w1p = jnp.pad(jnp.asarray(w1, jnp.float32), ((0, 0), (0, h_pad - hidden)))
    b1p = jnp.pad(jnp.asarray(b1, jnp.float32).reshape(1, hidden),
                  ((0, 0), (0, h_pad - hidden)))
    w2c = jnp.pad(jnp.asarray(w2, jnp.float32).reshape(hidden, 1),
                  ((0, h_pad - hidden), (0, 0)))            # (Hpad, 1) column
    b2s = jnp.asarray(b2, jnp.float32).reshape(1, 1)        # scalar -> SMEM

    out = pl.pallas_call(
        _critic_kernel,
        out_shape=jax.ShapeDtypeStruct((grid[0], 1, tb), jnp.float32),
        grid=grid,
        in_specs=[
            # x tiles stream HBM->VMEM, double-buffered by the Pallas pipeline.
            pl.BlockSpec((tb, in_dim), lambda i: (i, 0)),
            # Weights / bias: constant index map -> fetched once, stay resident.
            pl.BlockSpec((in_dim, h_pad), lambda i: (0, 0)),
            pl.BlockSpec((1, h_pad), lambda i: (0, 0)),
            pl.BlockSpec((h_pad, 1), lambda i: (0, 0)),
            # b2 is a single scalar: keep it in SMEM, not a padded VMEM tile.
            pl.BlockSpec(memory_space=pltpu.MemorySpace.SMEM),
        ],
        out_specs=pl.BlockSpec((1, 1, tb), lambda i: (i, 0, 0)),
        compiler_params=pltpu.CompilerParams(
            dimension_semantics=("parallel",)),
    )(xp, w1p, b1p, w2c, b2s)

    # (G, 1, TB) lane-dense slab -> (batch, 1); padded rows are sliced away.
    return out.reshape(b_pad, 1)[:batch]


def reference_forward(x, w1, b1, w2, b2):
    h = jnp.maximum(x @ w1 + b1.reshape(1, -1), 0.0)
    return jnp.tanh(h @ w2 + jnp.asarray(b2, jnp.float32).reshape(1, 1))


if __name__ == "__main__":
    key = jax.random.PRNGKey(0)
    k_x, k_w1, k_b1, k_w2, k_b2 = jax.random.split(key, 5)

    batch, in_dim, hidden = 8, 16, 32

    x = jax.random.normal(k_x, (batch, in_dim), dtype=jnp.float32)
    # Deterministic synthetic parameters (PyTorch-style uniform fan-in init).
    lim1 = 1.0 / jnp.sqrt(in_dim)
    lim2 = 1.0 / jnp.sqrt(hidden)
    w1 = jax.random.uniform(k_w1, (in_dim, hidden), jnp.float32, -lim1, lim1)
    b1 = jax.random.uniform(k_b1, (1, hidden), jnp.float32, -lim1, lim1)
    w2 = jax.random.uniform(k_w2, (hidden, 1), jnp.float32, -lim2, lim2)
    b2 = jax.random.uniform(k_b2, (1, 1), jnp.float32, -lim2, lim2)

    out = jax.block_until_ready(critic_forward(x, w1, b1, w2, b2))
    ref = reference_forward(x, w1, b1, w2, b2)

    assert out.shape == (batch, 1)
    assert jnp.allclose(out, ref, atol=1e-5, rtol=1e-5)

    print("KERNEL_OK")
</pallas_src>

<mosaic_0001>
module attributes {stable_mosaic.version = 11 : i64} {
  func.func @_critic_kernel(%arg0: i32, %arg1: memref<128x16xf32, #tpu.memory_space<vmem>>, %arg2: memref<16x128xf32, #tpu.memory_space<vmem>>, %arg3: memref<1x128xf32, #tpu.memory_space<vmem>>, %arg4: memref<128x1xf32, #tpu.memory_space<vmem>>, %arg5: memref<1x1xf32, #tpu.memory_space<smem>>, %arg6: memref<1x1x128xf32, #tpu.memory_space<vmem>>) attributes {dimension_semantics = [#tpu.dimension_semantics<parallel>], iteration_bounds = array<i64: 1>, scalar_prefetch = 0 : i64, scratch_operands = 0 : i64, tpu.core_type = #tpu.core_type<tc>, window_params = [{transform_indices = @transform_0, window_bounds = array<i64: 128, 16>}, {pipeline_mode = #tpu.pipeline_mode<synchronous>, transform_indices = @transform_1, window_bounds = array<i64: 16, 128>}, {pipeline_mode = #tpu.pipeline_mode<synchronous>, transform_indices = @transform_2, window_bounds = array<i64: 1, 128>}, {pipeline_mode = #tpu.pipeline_mode<synchronous>, transform_indices = @transform_3, window_bounds = array<i64: 128, 1>}, {transform_indices = @transform_4, window_bounds = array<i64: 1, 1>}, {transform_indices = @transform_5, window_bounds = array<i64: 1, 1, 128>}]} {
    %c0 = arith.constant 0 : index
    %c0_0 = arith.constant 0 : index
    %0 = vector.load %arg1[%c0, %c0_0] : memref<128x16xf32, #tpu.memory_space<vmem>>, vector<128x16xf32>
    %c0_1 = arith.constant 0 : index
    %c0_2 = arith.constant 0 : index
    %1 = vector.load %arg2[%c0_1, %c0_2] : memref<16x128xf32, #tpu.memory_space<vmem>>, vector<16x128xf32>
    %cst = arith.constant dense<0.000000e+00> : vector<128x128xf32>
    %2 = tpu.matmul %0, %1, %cst {dimension_numbers = #tpu.dot_dimension_numbers<[1], [0], [0], [1], [0, 0, 1, 1], [], []>} : vector<128x16xf32>, vector<16x128xf32>, vector<128x128xf32> -> vector<128x128xf32>
    %c0_3 = arith.constant 0 : index
    %c0_4 = arith.constant 0 : index
    %3 = vector.load %arg3[%c0_3, %c0_4] : memref<1x128xf32, #tpu.memory_space<vmem>>, vector<1x128xf32>
    %4 = vector.broadcast %3 : vector<1x128xf32> to vector<128x128xf32>
    %5 = arith.addf %2, %4 : vector<128x128xf32>
    %cst_5 = arith.constant 0.000000e+00 : f32
    %6 = vector.broadcast %cst_5 : f32 to vector<128x128xf32>
    %7 = arith.maximumf %5, %6 : vector<128x128xf32>
    %8 = tpu.transpose %7, [1, 0] : vector<128x128xf32> -> vector<128x128xf32>
    %c0_6 = arith.constant 0 : index
    %c0_7 = arith.constant 0 : index
    %9 = vector.load %arg4[%c0_6, %c0_7] : memref<128x1xf32, #tpu.memory_space<vmem>>, vector<128x1xf32>
    %10 = vector.broadcast %9 : vector<128x1xf32> to vector<128x128xf32>
    %11 = arith.mulf %8, %10 : vector<128x128xf32>
    %cst_8 = arith.constant dense<0.000000e+00> : vector<128xf32>
    %12 = vector.multi_reduction <add>, %11, %cst_8 [0] : vector<128x128xf32> to vector<128xf32>
    %13 = vector.shape_cast %12 : vector<128xf32> to vector<1x128xf32>
    %c0_9 = arith.constant 0 : index
    %c0_10 = arith.constant 0 : index
    %14 = memref.load %arg5[%c0_9, %c0_10] : memref<1x1xf32, #tpu.memory_space<smem>>
    %15 = vector.broadcast %14 : f32 to vector<1x128xf32>
    %16 = arith.addf %13, %15 : vector<1x128xf32>
    %17 = math.tanh %16 : vector<1x128xf32>
    %18 = vector.shape_cast %17 : vector<1x128xf32> to vector<1x1x128xf32>
    %c0_11 = arith.constant 0 : index
    %c0_12 = arith.constant 0 : index
    %c0_13 = arith.constant 0 : index
    %19 = vector.load %arg6[%c0_11, %c0_12, %c0_13] : memref<1x1x128xf32, #tpu.memory_space<vmem>>, vector<1x1x128xf32>
    tpu.vector_store %arg6[%c0_11, %c0_12, %c0_13], %18 {strides = array<i32>} : memref<1x1x128xf32, #tpu.memory_space<vmem>>, vector<1x1x128xf32>,
    return
  }
  func.func @transform_0(%arg0: i32) -> (i32, i32) {
    %c0_i32 = arith.constant 0 : i32
    %c0_i32_0 = arith.constant 0 : i32
    return %arg0, %c0_i32 : i32, i32
  }
  func.func @transform_1(%arg0: i32) -> (i32, i32) {
    %c0_i32 = arith.constant 0 : i32
    %c0_i32_0 = arith.constant 0 : i32
    %c0_i32_1 = arith.constant 0 : i32
    return %c0_i32, %c0_i32_0 : i32, i32
  }
  func.func @transform_2(%arg0: i32) -> (i32, i32) {
    %c0_i32 = arith.constant 0 : i32
    %c0_i32_0 = arith.constant 0 : i32
    %c0_i32_1 = arith.constant 0 : i32
    return %c0_i32, %c0_i32_0 : i32, i32
  }
  func.func @transform_3(%arg0: i32) -> (i32, i32) {
    %c0_i32 = arith.constant 0 : i32
    %c0_i32_0 = arith.constant 0 : i32
    %c0_i32_1 = arith.constant 0 : i32
    return %c0_i32, %c0_i32_0 : i32, i32
  }
  func.func @transform_4(%arg0: i32) -> (i32, i32) {
    %c0_i32 = arith.constant 0 : i32
    %c0_i32_0 = arith.constant 0 : i32
    %c0_i32_1 = arith.constant 0 : i32
    return %c0_i32, %c0_i32_0 : i32, i32
  }
  func.func @transform_5(%arg0: i32) -> (i32, i32, i32) {
    %c0_i32 = arith.constant 0 : i32
    %c0_i32_0 = arith.constant 0 : i32
    %c0_i32_1 = arith.constant 0 : i32
    return %arg0, %c0_i32, %c0_i32_0 : i32, i32, i32
  }
}

</mosaic_0001>

<llo_original>
// kernel: tpu_custom_call.1
$region0: #{tpu_custom_call.1}
  #allocation0 [shape = 'u32[]', space=smem, size = 0x4, offset = 0x4, fixed_abs, tag = 'smem constant byte address 0x4 - core index']
  #allocation1 [shape = 'u32[144,128]{1,0:T(1,128)}', space=vmem, size = 0x12000, scoped, tag = 'internal scratch']
  #allocation2 [shape = 'f32[1,1]{1,0:T(1,128)S(6)}', space=smem, size = 0x200, scoped, tag = 'scoped memory for tpu_custom_call.1']
  %s0 = inlined_call_operand.vmem [shape: f32[128,16], index: 0, kind: input, shape index: {}]
  %s1 = inlined_call_operand.vmem [shape: f32[16,128], index: 1, kind: input, shape index: {}]
  %s2 = inlined_call_operand.vmem [shape: f32[1,128], index: 2, kind: input, shape index: {}]
  %s3 = inlined_call_operand.vmem [shape: f32[128,1], index: 3, kind: input, shape index: {}]
  %s4 = inlined_call_operand.<no memory space> [shape: f32[1,1], index: 4, kind: input, shape index: {}]
  %s5 = inlined_call_operand.hbm [shape: f32[1,1,128], index: 5, kind: output, shape index: {}]
  %s6 = sld [smem:[#allocation0]]
  $region30: #{tpu_custom_call.1} parent=0
    _
  %s8 = ssub.s32 1, %s6
  %s9 = scalar_select 0, %s8, %s6
  %10 = sst [smem:[#allocation2]] %s4
  $region1: #{tpu_custom_call.1} parent=0
    #allocation3 [shape = 'u8[512]{0}', space=vmem, size = 0x400, scoped, tag = 'output window, operand 0, single buffered']
    #allocation4 [shape = 's32[1]{0}', space=sflag, size = 0x4, scoped, tag = 'scoped memory for tpu_custom_call.1']
    %11 = vsyncpa [#allocation4], 0
    // Predicated region
    $region2: #{tpu_custom_call.1} parent=1 // pred_check
      _
    $region3: #{tpu_custom_call.1} parent=1 // pred_check_branch
      %13 = sbr.rel (0) target = $region5
    $region4: #{tpu_custom_call.1} parent=1 // pred_region
      _
    $region5: #{tpu_custom_call.1} parent=1 // pred_fallthru
      _
    // Predicated region
    $region6: #{tpu_custom_call.1} parent=1 // pred_check
      _
    $region7: #{tpu_custom_call.1} parent=1 // pred_check_branch
      %15 = sbr.rel (0) target = $region9
    $region8: #{tpu_custom_call.1} parent=1 // pred_region
      _
    $region9: #{tpu_custom_call.1} parent=1 // pred_fallthru
      _
    // Predicated region
    $region10: #{tpu_custom_call.1} parent=1 // pred_check
      _
    $region11: #{tpu_custom_call.1} parent=1 // pred_check_branch
      %17 = sbr.rel (0) target = $region13
    $region12: #{tpu_custom_call.1} parent=1 // pred_region
      _
    $region13: #{tpu_custom_call.1} parent=1 // pred_fallthru
      _
    // Predicated region
    $region14: #{tpu_custom_call.1} parent=1 // pred_check
      _
    $region15: #{tpu_custom_call.1} parent=1 // pred_check_branch
      %19 = sbr.rel (0) target = $region17
    $region16: #{tpu_custom_call.1} parent=1 // pred_region
      _
    $region17: #{tpu_custom_call.1} parent=1 // pred_fallthru
      _
    // Predicated region
    $region18: #{tpu_custom_call.1} parent=1 // pred_check
      _
    $region19: #{tpu_custom_call.1} parent=1 // pred_check_branch
      %21 = sbr.rel (0) target = $region21
    $region20: #{tpu_custom_call.1} parent=1 // pred_region
      _
    $region21: #{tpu_custom_call.1} parent=1 // pred_fallthru
      _
    %v22 = vld [vmem:[%s0] sm:$0xff]
    %v23 = vld [vmem:[%s0 + $0x8] sm:$0xff]
    %v24 = vld [vmem:[%s0 + $0x10] sm:$0xff]
    %v25 = vld [vmem:[%s0 + $0x18] sm:$0xff]
    %v26 = vld [vmem:[%s0 + $0x20] sm:$0xff]
    %v27 = vld [vmem:[%s0 + $0x28] sm:$0xff]
    %v28 = vld [vmem:[%s0 + $0x30] sm:$0xff]
    %v29 = vld [vmem:[%s0 + $0x38] sm:$0xff]
    %v30 = vld [vmem:[%s0 + $0x40] sm:$0xff]
    %v31 = vld [vmem:[%s0 + $0x48] sm:$0xff]
    %v32 = vld [vmem:[%s0 + $0x50] sm:$0xff]
    %v33 = vld [vmem:[%s0 + $0x58] sm:$0xff]
    %v34 = vld [vmem:[%s0 + $0x60] sm:$0xff]
    %v35 = vld [vmem:[%s0 + $0x68] sm:$0xff]
    %v36 = vld [vmem:[%s0 + $0x70] sm:$0xff]
    %v37 = vld [vmem:[%s0 + $0x78] sm:$0xff]
    %v38 = vld [vmem:[%s1] sm:$0xff]
    %v39 = vld [vmem:[%s1 + $0x8] sm:$0xff]
    %v40 = vld [vmem:[%s2] sm:$0x1]
    %v42 = vlaneseq
    %v43 = vshrl.u32 %v42, 7
    %v44 = vsub.s32 0, %v43
    %v45 = vrot.slane %v40, %v44
    %vm47 = vcmask 130048
    %v49 = vsel %vm47, %v22, 0
    %v52 = vsel %vm47, %v23, 0
    %v55 = vsel %vm47, %v24, 0
    %v58 = vsel %vm47, %v25, 0
    %v61 = vsel %vm47, %v26, 0
    %v64 = vsel %vm47, %v27, 0
    %v67 = vsel %vm47, %v28, 0
    %v70 = vsel %vm47, %v29, 0
    %v73 = vsel %vm47, %v30, 0
    %v76 = vsel %vm47, %v31, 0
    %v79 = vsel %vm47, %v32, 0
    %v82 = vsel %vm47, %v33, 0
    %v85 = vsel %vm47, %v34, 0
    %v88 = vsel %vm47, %v35, 0
    %v91 = vsel %vm47, %v36, 0
    %v94 = vsel %vm47, %v37, 0
    %96 = vmatprep.subr.mxu0 0.0
    %97 = vmatpush1.msra.mxu0 %v38
    %98 = vmatprep.subr.mxu0 0.0
    %99 = vmatpush1.msra.mxu0 %v39
    %100 = vmatprep.subr.mxu0 0.0
    %101 = vmatpush1.msra.mxu0 0.0
    %102 = vmatprep.subr.mxu0 0.0
    %103 = vmatpush1.msra.mxu0 0.0
    %104 = vmatprep.subr.mxu0 0.0
    %105 = vmatpush1.msra.mxu0 0.0
    %106 = vmatprep.subr.mxu0 0.0
    %107 = vmatpush1.msra.mxu0 0.0
    %108 = vmatprep.subr.mxu0 0.0
    %109 = vmatpush1.msra.mxu0 0.0
    %110 = vmatprep.subr.mxu0 0.0
    %111 = vmatpush1.msra.mxu0 0.0
    %112 = vmatprep.subr.mxu0 0.0
    %113 = vmatpush1.msra.mxu0 0.0
    %114 = vmatprep.subr.mxu0 0.0
    %115 = vmatpush1.msra.mxu0 0.0
    %116 = vmatprep.subr.mxu0 0.0
    %117 = vmatpush1.msra.mxu0 0.0
    %118 = vmatprep.subr.mxu0 0.0
    %119 = vmatpush1.msra.mxu0 0.0
    %120 = vmatprep.subr.mxu0 0.0
    %121 = vmatpush1.msra.mxu0 0.0
    %122 = vmatprep.subr.mxu0 0.0
    %123 = vmatpush1.msra.mxu0 0.0
    %124 = vmatprep.subr.mxu0 0.0
    %125 = vmatpush1.msra.mxu0 0.0
    %126 = vmatprep.subr.mxu0 0.0
    %127 = vmatpush1.msra.mxu0 0.0
    %128 = vmatprep.subr.mxu0 0.0
    %129 = vmatpush1.msra.mxu0 0.0
    %130 = vmatprep.subr.mxu0 0.0
    %131 = vmatpush1.msra.mxu0 0.0
    %132 = vmatprep.subr.mxu0 0.0
    %133 = vmatpush1.msra.mxu0 0.0
    %134 = vmatprep.subr.mxu0 0.0
    %135 = vmatpush1.msra.mxu0 0.0
    %136 = vmatprep.subr.mxu0 0.0
    %137 = vmatpush1.msra.mxu0 0.0
    %138 = vmatprep.subr.mxu0 0.0
    %139 = vmatpush1.msra.mxu0 0.0
    %140 = vmatprep.subr.mxu0 0.0
    %141 = vmatpush1.msra.mxu0 0.0
    %142 = vmatprep.subr.mxu0 0.0
    %143 = vmatpush1.msra.mxu0 0.0
    %144 = vmatprep.subr.mxu0 0.0
    %145 = vmatpush1.msra.mxu0 0.0
    %146 = vmatprep.subr.mxu0 0.0
    %147 = vmatpush1.msra.mxu0 0.0
    %148 = vmatprep.subr.mxu0 0.0
    %149 = vmatpush1.msra.mxu0 0.0
    %150 = vmatprep.subr.mxu0 0.0
    %151 = vmatpush1.msra.mxu0 0.0
    %152 = vmatprep.subr.mxu0 0.0
    %153 = vmatpush1.msra.mxu0 0.0
    %154 = vmatprep.subr.mxu0 0.0
    %155 = vmatpush1.msra.mxu0 0.0
    %156 = vmatprep.subr.mxu0 0.0
    %157 = vmatpush1.msra.mxu0 0.0
    %158 = vmatprep.subr.mxu0 0.0
    %159 = vmatpush1.msra.mxu0 0.0
    %160 = vmatprep.mubr.f32.mxu0 0.0
    %161 = vmatmul.mubr.f32.gmra.mrb[0].mxu0 %v49
    %v162 = vpop.f32.mrb[0].mxu0
    %v163 = vadd.f32 %v45, %v162
    %v164 = vpop.f32.mrb[0].mxu0
    %165 = vmatprep.mubr.f32.mxu0 0.0
    %166 = vmatmul.mubr.f32.gmra.mrb[0].mxu0 %v52
    %v167 = vpop.f32.mrb[0].mxu0
    %v168 = vadd.f32 %v45, %v167
    %v169 = vpop.f32.mrb[0].mxu0
    %170 = vmatprep.mubr.f32.mxu0 0.0
    %171 = vmatmul.mubr.f32.gmra.mrb[0].mxu0 %v55
    %v172 = vpop.f32.mrb[0].mxu0
    %v173 = vadd.f32 %v45, %v172
    %v174 = vpop.f32.mrb[0].mxu0
    %175 = vmatprep.mubr.f32.mxu0 0.0
    %176 = vmatmul.mubr.f32.gmra.mrb[0].mxu0 %v58
    %v177 = vpop.f32.mrb[0].mxu0
    %v178 = vadd.f32 %v45, %v177
    %v179 = vpop.f32.mrb[0].mxu0
    %180 = vmatprep.mubr.f32.mxu0 0.0
    %181 = vmatmul.mubr.f32.gmra.mrb[0].mxu0 %v61
    %v182 = vpop.f32.mrb[0].mxu0
    %v183 = vadd.f32 %v45, %v182
    %v184 = vpop.f32.mrb[0].mxu0
    %185 = vmatprep.mubr.f32.mxu0 0.0
    %186 = vmatmul.mubr.f32.gmra.mrb[0].mxu0 %v64
    %v187 = vpop.f32.mrb[0].mxu0
    %v188 = vadd.f32 %v45, %v187
    %v189 = vpop.f32.mrb[0].mxu0
    %190 = vmatprep.mubr.f32.mxu0 0.0
    %191 = vmatmul.mubr.f32.gmra.mrb[0].mxu0 %v67
    %v192 = vpop.f32.mrb[0].mxu0
    %v193 = vadd.f32 %v45, %v192
    %v194 = vpop.f32.mrb[0].mxu0
    %195 = vmatprep.mubr.f32.mxu0 0.0
    %196 = vmatmul.mubr.f32.gmra.mrb[0].mxu0 %v70
    %v197 = vpop.f32.mrb[0].mxu0
    %v198 = vadd.f32 %v45, %v197
    %v199 = vpop.f32.mrb[0].mxu0
    %200 = vmatprep.mubr.f32.mxu0 0.0
    %201 = vmatmul.mubr.f32.gmra.mrb[0].mxu0 %v73
    %v202 = vpop.f32.mrb[0].mxu0
    %v203 = vadd.f32 %v45, %v202
    %v204 = vpop.f32.mrb[0].mxu0
    %205 = vmatprep.mubr.f32.mxu0 0.0
    %206 = vmatmul.mubr.f32.gmra.mrb[0].mxu0 %v76
    %v207 = vpop.f32.mrb[0].mxu0
    %v208 = vadd.f32 %v45, %v207
    %v209 = vpop.f32.mrb[0].mxu0
    %210 = vmatprep.mubr.f32.mxu0 0.0
    %211 = vmatmul.mubr.f32.gmra.mrb[0].mxu0 %v79
    %v212 = vpop.f32.mrb[0].mxu0
    %v213 = vadd.f32 %v45, %v212
    %v214 = vpop.f32.mrb[0].mxu0
    %215 = vmatprep.mubr.f32.mxu0 0.0
    %216 = vmatmul.mubr.f32.gmra.mrb[0].mxu0 %v82
    %v217 = vpop.f32.mrb[0].mxu0
    %v218 = vadd.f32 %v45, %v217
    %v219 = vpop.f32.mrb[0].mxu0
    %220 = vmatprep.mubr.f32.mxu0 0.0
    %221 = vmatmul.mubr.f32.gmra.mrb[0].mxu0 %v85
    %v222 = vpop.f32.mrb[0].mxu0
    %v223 = vadd.f32 %v45, %v222
    %v224 = vpop.f32.mrb[0].mxu0
    %225 = vmatprep.mubr.f32.mxu0 0.0
    %226 = vmatmul.mubr.f32.gmra.mrb[0].mxu0 %v88
    %v227 = vpop.f32.mrb[0].mxu0
    %v228 = vadd.f32 %v45, %v227
    %v229 = vpop.f32.mrb[0].mxu0
    %230 = vmatprep.mubr.f32.mxu0 0.0
    %231 = vmatmul.mubr.f32.gmra.mrb[0].mxu0 %v91
    %v232 = vpop.f32.mrb[0].mxu0
    %v233 = vadd.f32 %v45, %v232
    %v234 = vpop.f32.mrb[0].mxu0
    %235 = vmatprep.mubr.f32.mxu0 0.0
    %236 = vmatmul.mubr.f32.gmra.mrb[0].mxu0 %v94
    %v237 = vpop.f32.mrb[0].mxu0
    %v238 = vadd.f32 %v45, %v237
    %v239 = vpop.f32.mrb[0].mxu0
    %240 = vdwg.mxu0
    %v241 = vmax.f32 %v163, 0.0
    %v242 = vmax.f32 %v168, 0.0
    %v243 = vmax.f32 %v173, 0.0
    %v244 = vmax.f32 %v178, 0.0
    %v245 = vmax.f32 %v183, 0.0
    %v246 = vmax.f32 %v188, 0.0
    %v247 = vmax.f32 %v193, 0.0
    %v248 = vmax.f32 %v198, 0.0
    %v249 = vmax.f32 %v203, 0.0
    %v250 = vmax.f32 %v208, 0.0
    %v251 = vmax.f32 %v213, 0.0
    %v252 = vmax.f32 %v218, 0.0
    %v253 = vmax.f32 %v223, 0.0
    %v254 = vmax.f32 %v228, 0.0
    %v255 = vmax.f32 %v233, 0.0
    %v256 = vmax.f32 %v238, 0.0
    %257 = vxpose.xlu0.b32.start [1/16] %v241, 128
    %258 = vxpose.xlu0.b32.cont [2/16] %v242, 128
    %259 = vxpose.xlu0.b32.cont [3/16] %v243, 128
    %260 = vxpose.xlu0.b32.cont [4/16] %v244, 128
    %261 = vxpose.xlu0.b32.cont [5/16] %v245, 128
    %262 = vxpose.xlu0.b32.cont [6/16] %v246, 128
    %263 = vxpose.xlu0.b32.cont [7/16] %v247, 128
    %264 = vxpose.xlu0.b32.cont [8/16] %v248, 128
    %265 = vxpose.xlu0.b32.cont [9/16] %v249, 128
    %266 = vxpose.xlu0.b32.cont [10/16] %v250, 128
    %267 = vxpose.xlu0.b32.cont [11/16] %v251, 128
    %268 = vxpose.xlu0.b32.cont [12/16] %v252, 128
    %269 = vxpose.xlu0.b32.cont [13/16] %v253, 128
    %270 = vxpose.xlu0.b32.cont [14/16] %v254, 128
    %271 = vxpose.xlu0.b32.cont [15/16] %v255, 128
    %272 = vxpose.xlu0.b32.end [16/16] %v256, 128
    %v273 = vpop.trf.xlu0
    %v274 = vpop.trf.xlu0
    %v275 = vpop.trf.xlu0
    %v276 = vpop.trf.xlu0
    %v277 = vpop.trf.xlu0
    %v278 = vpop.trf.xlu0
    %v279 = vpop.trf.xlu0
    %v280 = vpop.trf.xlu0
    %v281 = vpop.trf.xlu0
    %v282 = vpop.trf.xlu0
    %v283 = vpop.trf.xlu0
    %v284 = vpop.trf.xlu0
    %v285 = vpop.trf.xlu0
    %v286 = vpop.trf.xlu0
    %v287 = vpop.trf.xlu0
    %v288 = vpop.trf.xlu0
    %v289 = vld [vmem:[%s3] sm:$0xff]
    %v290 = vld [vmem:[%s3 + $0x8] sm:$0xff]
    %v291 = vld [vmem:[%s3 + $0x10] sm:$0xff]
    %v292 = vld [vmem:[%s3 + $0x18] sm:$0xff]
    %v293 = vld [vmem:[%s3 + $0x20] sm:$0xff]
    %v294 = vld [vmem:[%s3 + $0x28] sm:$0xff]
    %v295 = vld [vmem:[%s3 + $0x30] sm:$0xff]
    %v296 = vld [vmem:[%s3 + $0x38] sm:$0xff]
    %v297 = vld [vmem:[%s3 + $0x40] sm:$0xff]
    %v298 = vld [vmem:[%s3 + $0x48] sm:$0xff]
    %v299 = vld [vmem:[%s3 + $0x50] sm:$0xff]
    %v300 = vld [vmem:[%s3 + $0x58] sm:$0xff]
    %v301 = vld [vmem:[%s3 + $0x60] sm:$0xff]
    %v302 = vld [vmem:[%s3 + $0x68] sm:$0xff]
    %v303 = vld [vmem:[%s3 + $0x70] sm:$0xff]
    %v304 = vld [vmem:[%s3 + $0x78] sm:$0xff]
    %306 = vset.pattern.permute.xlu0 0
    %307 = vperm.xlu0 %306, %v289
    %v308 = vpop.permute.xlu0 %307
    %311 = vset.pattern.permute.xlu0 0
    %312 = vperm.xlu0 %311, %v290
    %v313 = vpop.permute.xlu0 %312
    %316 = vset.pattern.permute.xlu0 0
    %317 = vperm.xlu0 %316, %v291
    %v318 = vpop.permute.xlu0 %317
    %321 = vset.pattern.permute.xlu0 0
    %322 = vperm.xlu0 %321, %v292
    %v323 = vpop.permute.xlu0 %322
    %326 = vset.pattern.permute.xlu0 0
    %327 = vperm.xlu0 %326, %v293
    %v328 = vpop.permute.xlu0 %327
    %331 = vset.pattern.permute.xlu0 0
    %332 = vperm.xlu0 %331, %v294
    %v333 = vpop.permute.xlu0 %332
    %336 = vset.pattern.permute.xlu0 0
    %337 = vperm.xlu0 %336, %v295
    %v338 = vpop.permute.xlu0 %337
    %341 = vset.pattern.permute.xlu0 0
    %342 = vperm.xlu0 %341, %v296
    %v343 = vpop.permute.xlu0 %342
    %346 = vset.pattern.permute.xlu0 0
    %347 = vperm.xlu0 %346, %v297
    %v348 = vpop.permute.xlu0 %347
    %351 = vset.pattern.permute.xlu0 0
    %352 = vperm.xlu0 %351, %v298
    %v353 = vpop.permute.xlu0 %352
    %356 = vset.pattern.permute.xlu0 0
    %357 = vperm.xlu0 %356, %v299
    %v358 = vpop.permute.xlu0 %357
    %361 = vset.pattern.permute.xlu0 0
    %362 = vperm.xlu0 %361, %v300
    %v363 = vpop.permute.xlu0 %362
    %366 = vset.pattern.permute.xlu0 0
    %367 = vperm.xlu0 %366, %v301
    %v368 = vpop.permute.xlu0 %367
    %371 = vset.pattern.permute.xlu0 0
    %372 = vperm.xlu0 %371, %v302
    %v373 = vpop.permute.xlu0 %372
    %376 = vset.pattern.permute.xlu0 0
    %377 = vperm.xlu0 %376, %v303
    %v378 = vpop.permute.xlu0 %377
    %381 = vset.pattern.permute.xlu0 0
    %382 = vperm.xlu0 %381, %v304
    %v383 = vpop.permute.xlu0 %382
    %v385 = vmul.f32 %v273, %v308
    %v386 = vmul.f32 %v274, %v313
    %v387 = vmul.f32 %v275, %v318
    %v388 = vmul.f32 %v276, %v323
    %v389 = vmul.f32 %v277, %v328
    %v390 = vmul.f32 %v278, %v333
    %v391 = vmul.f32 %v279, %v338
    %v392 = vmul.f32 %v280, %v343
    %v393 = vmul.f32 %v281, %v348
    %v394 = vmul.f32 %v282, %v353
    %v395 = vmul.f32 %v283, %v358
    %v396 = vmul.f32 %v284, %v363
    %v397 = vmul.f32 %v285, %v368
    %v398 = vmul.f32 %v286, %v373
    %v399 = vmul.f32 %v287, %v378
    %v400 = vmul.f32 %v288, %v383
    %v401 = vadd.f32 %v385, %v386
    %v402 = vadd.f32 %v401, %v387
    %v403 = vadd.f32 %v402, %v388
    %v404 = vadd.f32 %v403, %v389
    %v405 = vadd.f32 %v404, %v390
    %v406 = vadd.f32 %v405, %v391
    %v407 = vadd.f32 %v406, %v392
    %v408 = vadd.f32 %v407, %v393
    %v409 = vadd.f32 %v408, %v394
    %v410 = vadd.f32 %v409, %v395
    %v411 = vadd.f32 %v410, %v396
    %v412 = vadd.f32 %v411, %v397
    %v413 = vadd.f32 %v412, %v398
    %v414 = vadd.f32 %v413, %v399
    %v415 = vadd.f32 %v414, %v400
    %v416 = vrot.slane %v415, 4
    %v417 = vadd.f32 %v415, %v416
    %v418 = vrot.slane %v417, 2
    %v419 = vadd.f32 %v417, %v418
    %v420 = vrot.slane %v419, 1
    %v421 = vadd.f32 %v419, %v420
    %s422 = sld [smem:[#allocation2]]
    %v423 = vstv %s422
    %v424 = vadd.f32 %v421, %v423
    %v425 = vtanh.pop %v424
    %426 = vst [vmem:[#allocation3] sm:$0x1] %v425
    // Predicated region
    $region22: #{tpu_custom_call.1} parent=1 // pred_check
      _
    $region23: #{tpu_custom_call.1} parent=1 // pred_check_branch
      %428 = sbr.rel (0) target = $region25
    $region24: #{tpu_custom_call.1} parent=1 // pred_region
      %s430 = ssub.s32 16, 16
      %431 = vsyncadd [#allocation4], %s430
      %s433 = sshll.u32 [#allocation3], 4
      %s434 = int_to_ptr.vmem [resolvable:$true] %s433
      %436 = dma.vmem_to_hbm [thread:$0]  %s434, 16, %s5, [#allocation4]
    $region25: #{tpu_custom_call.1} parent=1 // pred_fallthru
      _
    // Predicated region
    $region26: #{tpu_custom_call.1} parent=1 // pred_check
      _
    $region27: #{tpu_custom_call.1} parent=1 // pred_check_branch
      %438 = sbr.rel (0) target = $region29
    $region28: #{tpu_custom_call.1} parent=1 // pred_region
      %439 = dma.done [#allocation4], 16
    $region29: #{tpu_custom_call.1} parent=1 // pred_fallthru
      _
    %440 = vsyncpa [#allocation4], 1

</llo_original>
